<compile_context>
chip_gen: v5e
topology: v5e:2x2
jax: 0.10.0
libtpu: 0.0.40
codegen_flags: <defaults>
</compile_context>

<pallas_src>
import jax
import jax.numpy as jnp
from jax.experimental import pallas as pl
from jax.experimental.pallas import tpu as pltpu


def _clamped_expo_kernel(x_ref, o_ref):
    x = x_ref[...]
    y = jnp.exp(x) - jnp.asarray(1.0, x.dtype)
    o_ref[...] = jnp.clip(y, 0.0, 0.999999).astype(o_ref.dtype)


_DEFAULT_BLOCK_BYTES = 8 * 1024 * 1024    # 2 arrays x 2 buffers x 8 MiB = 32 MiB of VMEM buffers
_DEFAULT_VMEM_LIMIT = 48 * 1024 * 1024    # safe on v5e/v6e (128 MiB) and v7x (64 MiB per TC)


def _round_up(a: int, b: int) -> int:
    return -(-a // b) * b


def _pick_lane_width(n: int):
    """Widest lane dimension (multiple of 128) that divides n, or None."""
    for w in (16384, 8192, 4096, 2048, 1024, 512, 256, 128):
        if n % w == 0:
            return w
    return None


def _tpu_params():
    """(block_bytes, vmem_limit_bytes, num_tensorcores) with safe fallbacks."""
    block, vmem, cores = _DEFAULT_BLOCK_BYTES, _DEFAULT_VMEM_LIMIT, 1
    try:
        info = pltpu.get_tpu_info()
    except Exception:
        return block, vmem, cores
    try:
        cap = int(getattr(info, "vmem_capacity_bytes", 0) or 0)
    except Exception:
        cap = 0
    if cap > 0:
        vmem = min(vmem, (cap * 3) // 4)   # leave >=25% of physical VMEM as headroom
        block = min(block, vmem // 4)      # 2 arrays x 2 pipeline buffers per block
    for attr in ("num_cores", "core_count", "num_tensorcores", "cores_per_chip"):
        try:
            v = int(getattr(info, attr, 0) or 0)
        except Exception:
            v = 0
        if v > 0:
            cores = v
            break
    return block, vmem, cores


def _call_2d(x2d, *, block_bytes, vmem_limit, num_cores, aliases):
    """Run the elementwise kernel over a lane-dense (rows, lane) slab."""
    rows, lane = x2d.shape
    dtype = x2d.dtype
    itemsize = jnp.dtype(dtype).itemsize
    # Minimum sublane multiple per dtype: f32 -> 8, bf16/f16 -> 16, int8/fp8 -> 32.
    sublane = max(8, 32 // itemsize)

    if rows <= sublane:
        tr = rows                              # full-dim block: always a legal tiling
    else:
        rows_per_block = max(
            sublane, (block_bytes // (lane * itemsize)) // sublane * sublane)
        if rows_per_block >= rows:
            # Whole array fits in one block.  Only split when >=2 TensorCores
            # (v7x) can actually run grid steps in parallel; on single-TC
            # v5e/v6e a forced split just adds a serial grid step.
            if num_cores >= 2 and rows >= 2 * sublane:
                tr = min(rows, _round_up(pl.cdiv(rows, 2), sublane))  # balanced halves
            else:
                tr = rows
        else:
            tr = rows_per_block

    grid = (pl.cdiv(rows, tr),)   # ragged last block (if any) is masked => still correct
    cparams = pltpu.CompilerParams(
        # TODO(synk): on v7x verify with xprof that "parallel" shards grid steps across
        # both TensorCores; if one TC sits idle switch this axis to pltpu.CORE_PARALLEL.
        dimension_semantics=("parallel",),
        vmem_limit_bytes=vmem_limit,
    )
    return pl.pallas_call(
        _clamped_expo_kernel,
        out_shape=jax.ShapeDtypeStruct((rows, lane), dtype),
        grid=grid,
        in_specs=[pl.BlockSpec((tr, lane), lambda i: (i, 0))],
        out_specs=pl.BlockSpec((tr, lane), lambda i: (i, 0)),
        compiler_params=cparams,
        input_output_aliases=aliases,
    )(x2d)


def clamped_expo_mod(x: jax.Array, *, donate: bool = False) -> jax.Array:
    """Pallas TPU implementation of ClampedExpoMod.forward (pure elementwise)."""
    orig_shape = x.shape
    dtype = x.dtype
    n = x.size
    if n == 0:
        return x

    block_bytes, vmem_limit, num_cores = _tpu_params()
    aliases = {0: 0} if donate else {}

    # ---- Preferred path: lane-dense 2-D slab, zero padding ------------------
    lane = _pick_lane_width(n)
    if lane is not None:
        out2d = _call_2d(x.reshape(n // lane, lane),
                         block_bytes=block_bytes, vmem_limit=vmem_limit,
                         num_cores=num_cores, aliases=aliases)
        return out2d.reshape(orig_shape)

    # ---- Fallback: element count not a multiple of 128 ----------------------
    # Route the 128-aligned bulk through the same lane-dense 2-D path (keeps
    # unmasked, sublane-dense loads/stores) and run the <128-element tail as a
    # tiny single-shot kernel.  The concatenate costs one extra pass over the
    # output, but only for odd element counts.
    xf = x.reshape(-1)
    n_bulk = (n // 128) * 128
    pieces = []
    if n_bulk:
        blane = _pick_lane_width(n_bulk)
        bulk_out = _call_2d(xf[:n_bulk].reshape(n_bulk // blane, blane),
                            block_bytes=block_bytes, vmem_limit=vmem_limit,
                            num_cores=num_cores, aliases={})
        pieces.append(bulk_out.reshape(-1))
    tail = n - n_bulk
    if tail:
        tail_out = pl.pallas_call(
            _clamped_expo_kernel,
            out_shape=jax.ShapeDtypeStruct((tail,), dtype),
        )(xf[n_bulk:])
        pieces.append(tail_out)
    out = pieces[0] if len(pieces) == 1 else jnp.concatenate(pieces)
    return out.reshape(orig_shape)


if __name__ == "__main__":
    key = jax.random.PRNGKey(0)

    def ref(v):
        return jnp.clip(jnp.exp(v) - 1.0, 0.0, 0.999999)

    # NCHW input like the PyTorch module receives (lane-dense 2-D path).
    x1 = jax.random.normal(key, (2, 4, 16, 16), dtype=jnp.float32)
    y1 = jax.block_until_ready(clamped_expo_mod(x1))
    assert y1.shape == x1.shape and y1.dtype == x1.dtype
    assert jnp.allclose(y1, ref(x1), atol=1e-6, rtol=1e-6)

    # Larger (still small) spatial map: multi-row 2-D slab.
    x2 = jax.random.normal(jax.random.PRNGKey(0), (1, 3, 128, 128), dtype=jnp.float32)
    y2 = jax.block_until_ready(clamped_expo_mod(x2))
    assert jnp.allclose(y2, ref(x2), atol=1e-6, rtol=1e-6)

    # Element count NOT a multiple of 128: exercises the bulk + tail fallback.
    x3 = jax.random.normal(jax.random.PRNGKey(0), (2, 3, 71), dtype=jnp.float32)
    y3 = jax.block_until_ready(clamped_expo_mod(x3))
    assert y3.shape == x3.shape and y3.dtype == x3.dtype
    assert jnp.allclose(y3, ref(x3), atol=1e-6, rtol=1e-6)

    print("KERNEL_OK")
</pallas_src>

<mosaic_0001>
module attributes {stable_mosaic.version = 11 : i64} {
  func.func @_clamped_expo_kernel(%arg0: i32, %arg1: memref<1x2048xf32, #tpu.memory_space<vmem>>, %arg2: memref<1x2048xf32, #tpu.memory_space<vmem>>) attributes {dimension_semantics = [#tpu.dimension_semantics<parallel>], iteration_bounds = array<i64: 1>, scalar_prefetch = 0 : i64, scratch_operands = 0 : i64, tpu.core_type = #tpu.core_type<tc>, window_params = [{transform_indices = @transform_0, window_bounds = array<i64: 1, 2048>}, {transform_indices = @transform_1, window_bounds = array<i64: 1, 2048>}]} {
    %c0 = arith.constant 0 : index
    %c0_0 = arith.constant 0 : index
    %0 = vector.load %arg1[%c0, %c0_0] : memref<1x2048xf32, #tpu.memory_space<vmem>>, vector<1x2048xf32>
    %1 = math.exp %0 : vector<1x2048xf32>
    %cst = arith.constant 1.000000e+00 : f32
    %2 = vector.broadcast %cst : f32 to vector<1x2048xf32>
    %3 = arith.subf %1, %2 : vector<1x2048xf32>
    %cst_1 = arith.constant 0.000000e+00 : f32
    %cst_2 = arith.constant 0.999998986 : f32
    %4 = vector.broadcast %cst_1 : f32 to vector<1x2048xf32>
    %5 = arith.maximumf %4, %3 : vector<1x2048xf32>
    %6 = vector.broadcast %cst_2 : f32 to vector<1x2048xf32>
    %7 = arith.minimumf %6, %5 : vector<1x2048xf32>
    %c0_3 = arith.constant 0 : index
    %c0_4 = arith.constant 0 : index
    %8 = vector.load %arg2[%c0_3, %c0_4] : memref<1x2048xf32, #tpu.memory_space<vmem>>, vector<1x2048xf32>
    tpu.vector_store %arg2[%c0_3, %c0_4], %7 {strides = array<i32>} : memref<1x2048xf32, #tpu.memory_space<vmem>>, vector<1x2048xf32>,
    return
  }
  func.func @transform_0(%arg0: i32) -> (i32, i32) {
    %c0_i32 = arith.constant 0 : i32
    %c0_i32_0 = arith.constant 0 : i32
    return %arg0, %c0_i32 : i32, i32
  }
  func.func @transform_1(%arg0: i32) -> (i32, i32) {
    %c0_i32 = arith.constant 0 : i32
    %c0_i32_0 = arith.constant 0 : i32
    return %arg0, %c0_i32 : i32, i32
  }
}

</mosaic_0001>

<llo_original>
// kernel: tpu_custom_call.1
$region0: #{tpu_custom_call.1}
  #allocation0 [shape = 'u32[]', space=smem, size = 0x4, offset = 0x4, fixed_abs, tag = 'smem constant byte address 0x4 - core index']
  #allocation1 [shape = 'u32[72,128]{1,0:T(1,128)}', space=vmem, size = 0x9000, scoped, tag = 'internal scratch']
  %s0 = inlined_call_operand.hbm [shape: f32[1,2048], index: 0, kind: input, shape index: {}]
  %s1 = inlined_call_operand.hbm [shape: f32[1,2048], index: 1, kind: output, shape index: {}]
  %s2 = sld [smem:[#allocation0]]
  $region18: #{tpu_custom_call.1} parent=0
    _
  %s4 = ssub.s32 1, %s2
  %s5 = scalar_select 0, %s4, %s2
  $region1: #{tpu_custom_call.1} parent=0
    #allocation2 [shape = 'u8[8192]{0}', space=vmem, size = 0x2000, scoped, tag = 'input window, operand 0, single buffered']
    #allocation3 [shape = 's32[1]{0}', space=sflag, size = 0x4, scoped, tag = 'scoped memory for tpu_custom_call.1']
    #allocation4 [shape = 's32[1]{0}', space=sflag, size = 0x4, scoped, tag = 'scoped memory for tpu_custom_call.1']
    #allocation5 [shape = 'u8[8192]{0}', space=vmem, size = 0x2000, scoped, tag = 'output window, operand 0, single buffered']
    %6 = vsyncpa [#allocation3], 0
    %7 = vsyncpa [#allocation4], 0
    // Predicated region
    $region2: #{tpu_custom_call.1} parent=1 // pred_check
      _
    $region3: #{tpu_custom_call.1} parent=1 // pred_check_branch
      %9 = sbr.rel (0) target = $region5
    $region4: #{tpu_custom_call.1} parent=1 // pred_region
      %11 = vsyncadd [#allocation3], 0
      %s13 = sshll.u32 %s0, 4
      %s14 = int_to_ptr.hbm [resolvable:$true] %s13
      %s15 = sshll.u32 [#allocation2], 4
      %s16 = int_to_ptr.vmem [resolvable:$true] %s15
      %18 = dma.hbm_to_vmem [thread:$0]  %s14, 256, %s16, [#allocation3]
    $region5: #{tpu_custom_call.1} parent=1 // pred_fallthru
      _
    // Predicated region
    $region6: #{tpu_custom_call.1} parent=1 // pred_check
      _
    $region7: #{tpu_custom_call.1} parent=1 // pred_check_branch
      %20 = sbr.rel (0) target = $region9
    $region8: #{tpu_custom_call.1} parent=1 // pred_region
      %22 = dma.done [#allocation3], 256
    $region9: #{tpu_custom_call.1} parent=1 // pred_fallthru
      _
    %v23 = vld [vmem:[#allocation2] sm:$0xff]
    %v24 = vld [vmem:[#allocation2 + $0x8] sm:$0xff]
    %v25 = vmul.f32 %v23, 1.442695
    %v26 = vpow.pop %v25
    %v27 = vmul.f32 %v24, 1.442695
    %v28 = vpow.pop %v27
    %v29 = vsub.f32 %v26, 1.0
    %v30 = vsub.f32 %v28, 1.0
    %v31 = vmax.f32 %v29, 0.0
    %v32 = vmax.f32 %v30, 0.0
    %v33 = vmin.f32 %v31, 0.999999
    %v34 = vmin.f32 %v32, 0.999999
    %35 = vst [vmem:[#allocation5] sm:$0xff] %v33
    %36 = vst [vmem:[#allocation5 + $0x8] sm:$0xff] %v34
    // Predicated region
    $region10: #{tpu_custom_call.1} parent=1 // pred_check
      _
    $region11: #{tpu_custom_call.1} parent=1 // pred_check_branch
      %38 = sbr.rel (0) target = $region13
    $region12: #{tpu_custom_call.1} parent=1 // pred_region
      %40 = vsyncadd [#allocation4], 0
      %s42 = sshll.u32 [#allocation5], 4
      %s43 = int_to_ptr.vmem [resolvable:$true] %s42
      %s44 = sshll.u32 %s1, 4
      %s45 = int_to_ptr.hbm [resolvable:$true] %s44
      %47 = dma.vmem_to_hbm [thread:$0]  %s43, 256, %s45, [#allocation4]
    $region13: #{tpu_custom_call.1} parent=1 // pred_fallthru
      _
    // Predicated region
    $region14: #{tpu_custom_call.1} parent=1 // pred_check
      _
    $region15: #{tpu_custom_call.1} parent=1 // pred_check_branch
      %49 = sbr.rel (0) target = $region17
    $region16: #{tpu_custom_call.1} parent=1 // pred_region
      %51 = dma.done [#allocation4], 256
    $region17: #{tpu_custom_call.1} parent=1 // pred_fallthru
      _
    %52 = vsyncpa [#allocation3], 1
    %53 = vsyncpa [#allocation4], 1

</llo_original>
